<compile_context>
chip_gen: v7x
topology: tpu7x:2x2x1
jax: 0.10.0
libtpu: 0.0.40
codegen_flags: <defaults>
</compile_context>

<pallas_src>
import jax
import jax.numpy as jnp
import numpy as np
from jax import lax
from jax.experimental import pallas as pl
from jax.experimental.pallas import tpu as pltpu


def _make_block_kernel(C, C_lin_p, W, tH, res_scale, mm_dtype):
    L_out = tH * W
    L_ext = (tH + 4) * W

    def kernel(xw_ref, rm_ref, cm_ref, w1_ref, b1_ref, w2_ref, b2_ref,
               w3_ref, b3_ref, o_ref):
        x_ext = xw_ref[0, 0]                                    # (C, L_ext) f32

        # ---- conv1 (1x1) + ReLU, conv2 (1x1): pixels on lanes ----
        h1 = jnp.dot(w1_ref[...], x_ext.astype(mm_dtype),
                     preferred_element_type=jnp.float32)
        h1 = jnp.maximum(h1 + b1_ref[...], 0.0)                 # (C_exp, L_ext)
        h2 = jnp.dot(w2_ref[...], h1.astype(mm_dtype),
                     preferred_element_type=jnp.float32)
        # rows of the halo window that fall outside the image must be exactly
        # zero (3x3 zero padding); rm_ref is that per-tile row-validity mask.
        h2 = (h2 + b2_ref[...]) * rm_ref[0]                     # (C_lin_p, L_ext)

        # ---- conv3 (3x3, pad=1) as ONE im2col matmul ----
        cm = cm_ref[...]                                        # (2, L_out)
        left_ok, right_ok = cm[0:1, :], cm[1:2, :]
        patches = []
        for kh in range(3):
            for kw in range(3):
                off = (kh + 1) * W + (kw - 1)                   # static lane shift
                p = h2[:, off:off + L_out]                      # (C_lin_p, L_out)
                if kw == 0:
                    p = p * left_ok                             # kill col -1 wrap
                elif kw == 2:
                    p = p * right_ok                            # kill col W wrap
                patches.append(p)
        pat = jnp.concatenate(patches, axis=0).astype(mm_dtype)  # (9*C_lin_p, L_out)
        acc = jnp.dot(w3_ref[...], pat,
                      preferred_element_type=jnp.float32)       # (C, L_out)

        # ---- residual add on this tile's own rows (window interior) ----
        x_res = x_ext[:, 2 * W:(tH + 2) * W]                    # (C, L_out)
        y = x_res + (acc + b3_ref[...]) * res_scale
        o_ref[0] = y.astype(o_ref.dtype)

    return kernel


def wdsr_block(x, params, res_scale=1.0, row_tile=None,
               matmul_dtype=jnp.bfloat16):
    """x: (N, C, H, W) float32 (NCHW, same as the PyTorch module).

    params use torch Conv2d layouts:
      w1 (C*4, C, 1, 1), b1 (C*4,), w2 (Clin, C*4, 1, 1), b2 (Clin,),
      w3 (C, Clin, 3, 3), b3 (C,)   with Clin = int(C * 0.8).
    """
    w1, b1, w2, b2, w3, b3 = params
    N, C, H, W = x.shape
    C_exp = w1.shape[0]
    C_lin = w2.shape[0]

    if row_tile is None:
        row_tile = H
        for t in range(8, H):
            if H % t == 0 and (t * W) % 128 == 0:
                row_tile = t
                break
    assert H % row_tile == 0
    tH = row_tile
    n_tiles = H // tH
    L_out = tH * W
    L_ext = (tH + 4) * W

    # Pad the linear-conv channel count to a sublane multiple (8) so the
    # 9-patch im2col concat is tile-aligned; padded channels are all-zero.
    C_lin_p = max(8, ((C_lin + 7) // 8) * 8)

    f32 = jnp.float32
    w1t = w1.reshape(C_exp, C).astype(matmul_dtype)
    b1c = b1.reshape(C_exp, 1).astype(f32)
    w2t = jnp.zeros((C_lin_p, C_exp), f32).at[:C_lin].set(
        w2.reshape(C_lin, C_exp)).astype(matmul_dtype)
    b2c = jnp.zeros((C_lin_p, 1), f32).at[:C_lin, 0].set(b2.astype(f32))
    w3r = jnp.zeros((C, 3, 3, C_lin_p), f32).at[:, :, :, :C_lin].set(
        jnp.transpose(w3, (0, 2, 3, 1))).reshape(
            C, 9 * C_lin_p).astype(matmul_dtype)
    b3c = b3.reshape(C, 1).astype(f32)

    # Overlapping (tH + 4)-row windows (2-row halo each side) of the 2-row
    # zero-padded image, flattened so pixels are the lane axis.
    xp = jnp.pad(x, ((0, 0), (0, 0), (2, 2), (0, 0)))            # (N, C, H+4, W)
    win = np.arange(n_tiles)[:, None] * tH + np.arange(tH + 4)[None, :]
    xw = xp[:, :, win, :]                                        # (N, C, T, tH+4, W)
    xw = jnp.transpose(xw, (0, 2, 1, 3, 4)).reshape(N, n_tiles, C, L_ext)

    # Precomputed masks (constants): per-tile row validity and column edges.
    g = np.arange(n_tiles)[:, None] * tH + np.arange(tH + 4)[None, :] - 2
    rmask = ((g >= 0) & (g < H)).astype(np.float32)              # (T, tH+4)
    rowmask = jnp.asarray(np.repeat(rmask, W, axis=1).reshape(n_tiles, 1, L_ext))
    colv = np.arange(W)
    colmask = jnp.asarray(np.stack(
        [np.tile((colv != 0).astype(np.float32), tH),
         np.tile((colv != W - 1).astype(np.float32), tH)], axis=0))  # (2, L_out)

    kernel = _make_block_kernel(C, C_lin_p, W, tH, float(res_scale),
                                matmul_dtype)

    def full(a):
        nd = a.ndim
        return pl.BlockSpec(a.shape, lambda *_: (0,) * nd)

    out = pl.pallas_call(
        kernel,
        out_shape=jax.ShapeDtypeStruct((N, C, H * W), x.dtype),
        grid_spec=pltpu.PrefetchScalarGridSpec(
            num_scalar_prefetch=0,
            grid=(N, n_tiles),
            in_specs=[
                pl.BlockSpec((1, 1, C, L_ext), lambda n, i: (n, i, 0, 0)),   # xw
                pl.BlockSpec((1, 1, L_ext), lambda n, i: (i, 0, 0)),         # rowmask
                full(colmask),
                full(w1t), full(b1c), full(w2t), full(b2c), full(w3r), full(b3c),
            ],
            out_specs=pl.BlockSpec((1, C, L_out), lambda n, i: (n, 0, i)),
        ),
        compiler_params=pltpu.CompilerParams(
            dimension_semantics=("parallel", "parallel"),
            vmem_limit_bytes=32 * 1024 * 1024),
    )(xw, rowmask, colmask, w1t, b1c, w2t, b2c, w3r, b3c)
    return out.reshape(N, C, H, W)


def init_params(key, n_feats):
    expand, linear = 4, 0.8
    c_exp = n_feats * expand
    c_lin = int(n_feats * linear)
    ks = jax.random.split(key, 6)
    s = 0.1
    w1 = jax.random.normal(ks[0], (c_exp, n_feats, 1, 1), jnp.float32) * s
    b1 = jax.random.normal(ks[1], (c_exp,), jnp.float32) * s
    w2 = jax.random.normal(ks[2], (c_lin, c_exp, 1, 1), jnp.float32) * s
    b2 = jax.random.normal(ks[3], (c_lin,), jnp.float32) * s
    w3 = jax.random.normal(ks[4], (n_feats, c_lin, 3, 3), jnp.float32) * s
    b3 = jax.random.normal(ks[5], (n_feats,), jnp.float32) * s
    return (w1, b1, w2, b2, w3, b3)


def ref_block(x, params, res_scale=1.0):
    """Pure-JAX NCHW reference with torch Conv2d semantics."""
    w1, b1, w2, b2, w3, b3 = params
    dn = ('NCHW', 'OIHW', 'NCHW')
    h = lax.conv_general_dilated(x, w1, (1, 1), 'VALID', dimension_numbers=dn)
    h = jnp.maximum(h + b1[None, :, None, None], 0.0)
    h = lax.conv_general_dilated(h, w2, (1, 1), 'VALID', dimension_numbers=dn)
    h = h + b2[None, :, None, None]
    h = lax.conv_general_dilated(h, w3, (1, 1), ((1, 1), (1, 1)),
                                 dimension_numbers=dn)
    h = h + b3[None, :, None, None]
    return x + h * res_scale


if __name__ == "__main__":
    key = jax.random.PRNGKey(0)
    kx, kp = jax.random.split(key)

    N, C, H, W = 2, 4, 16, 16          # n_feats = 4, NCHW like the torch module
    x = jax.random.normal(kx, (N, C, H, W), jnp.float32)
    params = init_params(kp, C)

    out = wdsr_block(x, params, res_scale=1.0, row_tile=8)
    out = jax.block_until_ready(out)

    ref = ref_block(x, params, res_scale=1.0)
    # bf16 MXU operands (f32 accumulation) -> loosened tolerance vs f32 ref.
    np.testing.assert_allclose(np.asarray(out), np.asarray(ref),
                               rtol=2e-2, atol=2e-2)
    print("KERNEL_OK")
</pallas_src>

<mosaic_0001>
module attributes {stable_mosaic.version = 11 : i64} {
  func.func @kernel(%arg0: i32, %arg1: i32, %arg2: memref<1x1x4x192xf32, #tpu.memory_space<vmem>>, %arg3: memref<1x1x192xf32, #tpu.memory_space<vmem>>, %arg4: memref<2x128xf32, #tpu.memory_space<vmem>>, %arg5: memref<16x4xbf16, #tpu.memory_space<vmem>>, %arg6: memref<16x1xf32, #tpu.memory_space<vmem>>, %arg7: memref<8x16xbf16, #tpu.memory_space<vmem>>, %arg8: memref<8x1xf32, #tpu.memory_space<vmem>>, %arg9: memref<4x72xbf16, #tpu.memory_space<vmem>>, %arg10: memref<4x1xf32, #tpu.memory_space<vmem>>, %arg11: memref<1x4x128xf32, #tpu.memory_space<vmem>>) attributes {dimension_semantics = [#tpu.dimension_semantics<parallel>, #tpu.dimension_semantics<parallel>], iteration_bounds = array<i64: 2, 2>, scalar_prefetch = 0 : i64, scratch_operands = 0 : i64, tpu.core_type = #tpu.core_type<tc>, window_params = [{transform_indices = @transform_0, window_bounds = array<i64: 1, 1, 4, 192>}, {transform_indices = @transform_1, window_bounds = array<i64: 1, 1, 192>}, {pipeline_mode = #tpu.pipeline_mode<synchronous>, transform_indices = @transform_2, window_bounds = array<i64: 2, 128>}, {pipeline_mode = #tpu.pipeline_mode<synchronous>, transform_indices = @transform_3, window_bounds = array<i64: 16, 4>}, {pipeline_mode = #tpu.pipeline_mode<synchronous>, transform_indices = @transform_4, window_bounds = array<i64: 16, 1>}, {pipeline_mode = #tpu.pipeline_mode<synchronous>, transform_indices = @transform_5, window_bounds = array<i64: 8, 16>}, {pipeline_mode = #tpu.pipeline_mode<synchronous>, transform_indices = @transform_6, window_bounds = array<i64: 8, 1>}, {pipeline_mode = #tpu.pipeline_mode<synchronous>, transform_indices = @transform_7, window_bounds = array<i64: 4, 72>}, {pipeline_mode = #tpu.pipeline_mode<synchronous>, transform_indices = @transform_8, window_bounds = array<i64: 4, 1>}, {transform_indices = @transform_9, window_bounds = array<i64: 1, 4, 128>}]} {
    %c0 = arith.constant 0 : index
    %c0_0 = arith.constant 0 : index
    %c0_1 = arith.constant 0 : index
    %c0_2 = arith.constant 0 : index
    %0 = vector.load %arg2[%c0, %c0_0, %c0_1, %c0_2] : memref<1x1x4x192xf32, #tpu.memory_space<vmem>>, vector<1x1x4x192xf32>
    %1 = vector.shape_cast %0 : vector<1x1x4x192xf32> to vector<4x192xf32>
    %c0_3 = arith.constant 0 : index
    %c0_4 = arith.constant 0 : index
    %2 = vector.load %arg5[%c0_3, %c0_4] : memref<16x4xbf16, #tpu.memory_space<vmem>>, vector<16x4xbf16>
    %3 = arith.truncf %1 : vector<4x192xf32> to vector<4x192xbf16>
    %cst = arith.constant dense<0.000000e+00> : vector<16x192xf32>
    %4 = tpu.matmul %2, %3, %cst {dimension_numbers = #tpu.dot_dimension_numbers<[1], [0], [0], [1], [0, 0, 1, 1], [], []>} : vector<16x4xbf16>, vector<4x192xbf16>, vector<16x192xf32> -> vector<16x192xf32>
    %c0_5 = arith.constant 0 : index
    %c0_6 = arith.constant 0 : index
    %5 = vector.load %arg6[%c0_5, %c0_6] : memref<16x1xf32, #tpu.memory_space<vmem>>, vector<16x1xf32>
    %6 = vector.broadcast %5 : vector<16x1xf32> to vector<16x192xf32>
    %7 = arith.addf %4, %6 : vector<16x192xf32>
    %cst_7 = arith.constant 0.000000e+00 : f32
    %8 = vector.broadcast %cst_7 : f32 to vector<16x192xf32>
    %9 = arith.maximumf %7, %8 : vector<16x192xf32>
    %c0_8 = arith.constant 0 : index
    %c0_9 = arith.constant 0 : index
    %10 = vector.load %arg7[%c0_8, %c0_9] : memref<8x16xbf16, #tpu.memory_space<vmem>>, vector<8x16xbf16>
    %11 = arith.truncf %9 : vector<16x192xf32> to vector<16x192xbf16>
    %cst_10 = arith.constant dense<0.000000e+00> : vector<8x192xf32>
    %12 = tpu.matmul %10, %11, %cst_10 {dimension_numbers = #tpu.dot_dimension_numbers<[1], [0], [0], [1], [0, 0, 1, 1], [], []>} : vector<8x16xbf16>, vector<16x192xbf16>, vector<8x192xf32> -> vector<8x192xf32>
    %c0_11 = arith.constant 0 : index
    %c0_12 = arith.constant 0 : index
    %13 = vector.load %arg8[%c0_11, %c0_12] : memref<8x1xf32, #tpu.memory_space<vmem>>, vector<8x1xf32>
    %14 = vector.broadcast %13 : vector<8x1xf32> to vector<8x192xf32>
    %15 = arith.addf %12, %14 : vector<8x192xf32>
    %c0_13 = arith.constant 0 : index
    %c0_14 = arith.constant 0 : index
    %c0_15 = arith.constant 0 : index
    %16 = vector.load %arg3[%c0_13, %c0_14, %c0_15] : memref<1x1x192xf32, #tpu.memory_space<vmem>>, vector<1x1x192xf32>
    %17 = vector.shape_cast %16 : vector<1x1x192xf32> to vector<1x192xf32>
    %18 = vector.broadcast %17 : vector<1x192xf32> to vector<8x192xf32>
    %19 = arith.mulf %15, %18 : vector<8x192xf32>
    %c0_16 = arith.constant 0 : index
    %c0_17 = arith.constant 0 : index
    %20 = vector.load %arg4[%c0_16, %c0_17] : memref<2x128xf32, #tpu.memory_space<vmem>>, vector<2x128xf32>
    %21 = vector.extract_strided_slice %20 {offsets = [0, 0], sizes = [1, 128], strides = [1, 1]} : vector<2x128xf32> to vector<1x128xf32>
    %22 = vector.extract_strided_slice %20 {offsets = [1, 0], sizes = [1, 128], strides = [1, 1]} : vector<2x128xf32> to vector<1x128xf32>
    %23 = vector.extract_strided_slice %19 {offsets = [0, 15], sizes = [8, 128], strides = [1, 1]} : vector<8x192xf32> to vector<8x128xf32>
    %24 = vector.broadcast %21 : vector<1x128xf32> to vector<8x128xf32>
    %25 = arith.mulf %23, %24 : vector<8x128xf32>
    %26 = vector.extract_strided_slice %19 {offsets = [0, 16], sizes = [8, 128], strides = [1, 1]} : vector<8x192xf32> to vector<8x128xf32>
    %27 = vector.extract_strided_slice %19 {offsets = [0, 17], sizes = [8, 128], strides = [1, 1]} : vector<8x192xf32> to vector<8x128xf32>
    %28 = vector.broadcast %22 : vector<1x128xf32> to vector<8x128xf32>
    %29 = arith.mulf %27, %28 : vector<8x128xf32>
    %30 = vector.extract_strided_slice %19 {offsets = [0, 31], sizes = [8, 128], strides = [1, 1]} : vector<8x192xf32> to vector<8x128xf32>
    %31 = vector.broadcast %21 : vector<1x128xf32> to vector<8x128xf32>
    %32 = arith.mulf %30, %31 : vector<8x128xf32>
    %33 = vector.extract_strided_slice %19 {offsets = [0, 32], sizes = [8, 128], strides = [1, 1]} : vector<8x192xf32> to vector<8x128xf32>
    %34 = vector.extract_strided_slice %19 {offsets = [0, 33], sizes = [8, 128], strides = [1, 1]} : vector<8x192xf32> to vector<8x128xf32>
    %35 = vector.broadcast %22 : vector<1x128xf32> to vector<8x128xf32>
    %36 = arith.mulf %34, %35 : vector<8x128xf32>
    %37 = vector.extract_strided_slice %19 {offsets = [0, 47], sizes = [8, 128], strides = [1, 1]} : vector<8x192xf32> to vector<8x128xf32>
    %38 = vector.broadcast %21 : vector<1x128xf32> to vector<8x128xf32>
    %39 = arith.mulf %37, %38 : vector<8x128xf32>
    %40 = vector.extract_strided_slice %19 {offsets = [0, 48], sizes = [8, 128], strides = [1, 1]} : vector<8x192xf32> to vector<8x128xf32>
    %41 = vector.extract_strided_slice %19 {offsets = [0, 49], sizes = [8, 128], strides = [1, 1]} : vector<8x192xf32> to vector<8x128xf32>
    %42 = vector.broadcast %22 : vector<1x128xf32> to vector<8x128xf32>
    %43 = arith.mulf %41, %42 : vector<8x128xf32>
    %44 = tpu.concatenate %25, %26, %29, %32, %33, %36, %39, %40, %43 in 0 : vector<8x128xf32>, vector<8x128xf32>, vector<8x128xf32>, vector<8x128xf32>, vector<8x128xf32>, vector<8x128xf32>, vector<8x128xf32>, vector<8x128xf32>, vector<8x128xf32> -> vector<72x128xf32>
    %45 = arith.truncf %44 : vector<72x128xf32> to vector<72x128xbf16>
    %c0_18 = arith.constant 0 : index
    %c0_19 = arith.constant 0 : index
    %46 = vector.load %arg9[%c0_18, %c0_19] : memref<4x72xbf16, #tpu.memory_space<vmem>>, vector<4x72xbf16>
    %cst_20 = arith.constant dense<0.000000e+00> : vector<4x128xf32>
    %47 = tpu.matmul %46, %45, %cst_20 {dimension_numbers = #tpu.dot_dimension_numbers<[1], [0], [0], [1], [0, 0, 1, 1], [], []>} : vector<4x72xbf16>, vector<72x128xbf16>, vector<4x128xf32> -> vector<4x128xf32>
    %48 = vector.extract_strided_slice %1 {offsets = [0, 32], sizes = [4, 128], strides = [1, 1]} : vector<4x192xf32> to vector<4x128xf32>
    %c0_21 = arith.constant 0 : index
    %c0_22 = arith.constant 0 : index
    %49 = vector.load %arg10[%c0_21, %c0_22] : memref<4x1xf32, #tpu.memory_space<vmem>>, vector<4x1xf32>
    %50 = vector.broadcast %49 : vector<4x1xf32> to vector<4x128xf32>
    %51 = arith.addf %47, %50 : vector<4x128xf32>
    %cst_23 = arith.constant 1.000000e+00 : f32
    %52 = vector.broadcast %cst_23 : f32 to vector<4x128xf32>
    %53 = arith.mulf %51, %52 : vector<4x128xf32>
    %54 = arith.addf %48, %53 : vector<4x128xf32>
    %c0_24 = arith.constant 0 : index
    %c0_25 = arith.constant 0 : index
    %c0_26 = arith.constant 0 : index
    %55 = vector.load %arg11[%c0_24, %c0_25, %c0_26] : memref<1x4x128xf32, #tpu.memory_space<vmem>>, vector<1x4x128xf32>
    %56 = vector.shape_cast %55 : vector<1x4x128xf32> to vector<4x128xf32>
    %57 = vector.shape_cast %54 : vector<4x128xf32> to vector<1x4x128xf32>
    tpu.vector_store %arg11[%c0_24, %c0_25, %c0_26], %57 {strides = array<i32>} : memref<1x4x128xf32, #tpu.memory_space<vmem>>, vector<1x4x128xf32>,
    return
  }
  func.func @transform_0(%arg0: i32, %arg1: i32) -> (i32, i32, i32, i32) {
    %c0_i32 = arith.constant 0 : i32
    %c0_i32_0 = arith.constant 0 : i32
    %c0_i32_1 = arith.constant 0 : i32
    return %arg0, %arg1, %c0_i32, %c0_i32_0 : i32, i32, i32, i32
  }
  func.func @transform_1(%arg0: i32, %arg1: i32) -> (i32, i32, i32) {
    %c0_i32 = arith.constant 0 : i32
    %c0_i32_0 = arith.constant 0 : i32
    %c0_i32_1 = arith.constant 0 : i32
    return %arg1, %c0_i32, %c0_i32_0 : i32, i32, i32
  }
  func.func @transform_2(%arg0: i32, %arg1: i32) -> (i32, i32) {
    %c0_i32 = arith.constant 0 : i32
    %c0_i32_0 = arith.constant 0 : i32
    %c0_i32_1 = arith.constant 0 : i32
    return %c0_i32, %c0_i32_0 : i32, i32
  }
  func.func @transform_3(%arg0: i32, %arg1: i32) -> (i32, i32) {
    %c0_i32 = arith.constant 0 : i32
    %c0_i32_0 = arith.constant 0 : i32
    %c0_i32_1 = arith.constant 0 : i32
    return %c0_i32, %c0_i32_0 : i32, i32
  }
  func.func @transform_4(%arg0: i32, %arg1: i32) -> (i32, i32) {
    %c0_i32 = arith.constant 0 : i32
    %c0_i32_0 = arith.constant 0 : i32
    %c0_i32_1 = arith.constant 0 : i32
    return %c0_i32, %c0_i32_0 : i32, i32
  }
  func.func @transform_5(%arg0: i32, %arg1: i32) -> (i32, i32) {
    %c0_i32 = arith.constant 0 : i32
    %c0_i32_0 = arith.constant 0 : i32
    %c0_i32_1 = arith.constant 0 : i32
    return %c0_i32, %c0_i32_0 : i32, i32
  }
  func.func @transform_6(%arg0: i32, %arg1: i32) -> (i32, i32) {
    %c0_i32 = arith.constant 0 : i32
    %c0_i32_0 = arith.constant 0 : i32
    %c0_i32_1 = arith.constant 0 : i32
    return %c0_i32, %c0_i32_0 : i32, i32
  }
  func.func @transform_7(%arg0: i32, %arg1: i32) -> (i32, i32) {
    %c0_i32 = arith.constant 0 : i32
    %c0_i32_0 = arith.constant 0 : i32
    %c0_i32_1 = arith.constant 0 : i32
    return %c0_i32, %c0_i32_0 : i32, i32
  }
  func.func @transform_8(%arg0: i32, %arg1: i32) -> (i32, i32) {
    %c0_i32 = arith.constant 0 : i32
    %c0_i32_0 = arith.constant 0 : i32
    %c0_i32_1 = arith.constant 0 : i32
    return %c0_i32, %c0_i32_0 : i32, i32
  }
  func.func @transform_9(%arg0: i32, %arg1: i32) -> (i32, i32, i32) {
    %c0_i32 = arith.constant 0 : i32
    %c0_i32_0 = arith.constant 0 : i32
    return %arg0, %c0_i32, %arg1 : i32, i32, i32
  }
}

</mosaic_0001>

<llo_original>
// kernel: tpu_custom_call.1
$region0: #{tpu_custom_call.1}
  #allocation0 [shape = 'u32[]', space=smem, size = 0x4, offset = 0x4, fixed_abs, tag = 'smem constant byte address 0x4 - core index']
  #allocation1 [shape = 'u32[144,128]{1,0:T(1,128)}', space=vmem, size = 0x12000, scoped, tag = 'internal scratch']
  %s0 = inlined_call_operand.vmem [shape: f32[2,2,4,192], index: 0, kind: input, shape index: {}]
  %s1 = inlined_call_operand.vmem [shape: f32[2,1,192], index: 1, kind: input, shape index: {}]
  %s2 = inlined_call_operand.vmem [shape: f32[2,128], index: 2, kind: input, shape index: {}]
  %s3 = inlined_call_operand.vmem [shape: bf16[16,4], index: 3, kind: input, shape index: {}]
  %s4 = inlined_call_operand.vmem [shape: f32[16,1], index: 4, kind: input, shape index: {}]
  %s5 = inlined_call_operand.vmem [shape: bf16[8,16], index: 5, kind: input, shape index: {}]
  %s6 = inlined_call_operand.vmem [shape: f32[8,1], index: 6, kind: input, shape index: {}]
  %s7 = inlined_call_operand.vmem [shape: bf16[4,72], index: 7, kind: input, shape index: {}]
  %s8 = inlined_call_operand.vmem [shape: f32[4,1], index: 8, kind: input, shape index: {}]
  %s9 = inlined_call_operand.hbm [shape: f32[2,4,256], index: 9, kind: output, shape index: {}]
  %s10 = sld [smem:[#allocation0]]
  $region69: #{tpu_custom_call.1} parent=0
    _
  %s12 = ssub.s32 1, %s10
  %s13 = scalar_select 0, %s12, %s10
  $region1: #{tpu_custom_call.1} parent=0
    #allocation2 [shape = 'u8[4096]{0}', space=vmem, size = 0x1000, scoped, tag = 'output window, operand 0']
    #allocation3 [shape = 's32[2]{0}', space=sflag, size = 0x8, scoped, tag = 'scoped memory for tpu_custom_call.1']
    %14 = vsyncpa [#allocation3], 0
    %s15 = scalar_lea.sflag [#allocation3], 1
    %16 = vsyncpa %s15, 0
    loop: start=0, step=1, limit=6
    $region2: #{tpu_custom_call.1} parent=1 // loop_pre_header
      _
    $region3: #{tpu_custom_call.1} parent=1 // loop_header
      %s18 = sphi 0, %s22
      %p19 = scmp.ge.s32.totalorder %s18, 6
      %s25 = sphi 0, %s37
      %s26 = sphi 0, %s33
      %s27 = sphi 0, %s25
      %s28 = sphi 0, %s26
      %s29 = sphi 0, %s27
      %s30 = sphi 0, %s28
      %s42 = sphi 0, %s44
      %s45 = sphi 0, %s42
      %s46 = sphi 0, %s45
      %s62 = sphi 0, %s46
      %s68 = sphi 0, %s70
      %s71 = sphi 0, %s68
      %s72 = sphi 0, %s71
      %s88 = sphi 0, %s72
      %s92 = sphi 0, %s92
      %s94 = sphi 0, %s92
      %s95 = sphi 0, %s94
      %s109 = sphi 0, %s95
      %s113 = sphi 0, %s113
      %s115 = sphi 0, %s113
      %s116 = sphi 0, %s115
      %s130 = sphi 0, %s116
      %s134 = sphi 0, %s134
      %s136 = sphi 0, %s134
      %s137 = sphi 0, %s136
      %s151 = sphi 0, %s137
      %s155 = sphi 0, %s155
      %s157 = sphi 0, %s155
      %s158 = sphi 0, %s157
      %s172 = sphi 0, %s158
      %s176 = sphi 0, %s176
      %s178 = sphi 0, %s176
      %s179 = sphi 0, %s178
      %s193 = sphi 0, %s179
      %s197 = sphi 0, %s197
      %s199 = sphi 0, %s197
      %s200 = sphi 0, %s199
      %s214 = sphi 0, %s200
      %s218 = sphi 0, %s218
      %s220 = sphi 0, %s218
      %s221 = sphi 0, %s220
      %s235 = sphi 0, %s221
      %s243 = sphi 0, %s245
      %s246 = sphi 0, %s243
      %s247 = sphi 0, %s246
      %s263 = sphi 0, %s247
    $region4: #{tpu_custom_call.1} parent=1 // loop_header_branch
      %21 = sbr.rel (%p19) target = $region8
    $region5: #{tpu_custom_call.1} parent=1 // loop_body
      %s23 = ssub.s32 %s18, 1
      %s24 = ssub.s32 %s18, 2
      %s31 = sadd.s32 1, %s26
      %p32 = scmp.ge.s32.totalorder %s31, 2
      %s33 = scalar_select %p32, 0, %s31
      %s34 = sadd.s32 1, %s25
      %s35 = scalar_select %p32, %s34, %s25
      %p36 = scmp.ge.s32.totalorder %s35, 2
      %s37 = scalar_select %p36, 0, %s35
      %s38 = ssub.s32 %s25, %s37
      %s39 = ssub.s32 %s26, %s33
      %s40 = sor.u32 %s38, %s39
      %p41 = scmp.eq.s32.totalorder %s40, 0
      %s43 = sadd.s32 %s42, 1
      %s44 = scalar_select %p41, %s42, %s43
      %p47 = pneg %p41
      %p48 = scmp.eq.s32.totalorder %s18, 3
      %p49 = por %p47, %p48
      %p50 = scmp.ne.s32.totalorder %s42, %s45
      %p51 = scmp.eq.s32.totalorder %s18, 0
      %p52 = por %p50, %p51
      %p53 = scmp.ne.s32.totalorder %s42, %s45
      %p54 = scmp.eq.s32.totalorder %s23, 3
      %p55 = por %p53, %p54
      %p56 = scmp.ne.s32.totalorder %s45, %s46
      %p57 = scmp.eq.s32.totalorder %s23, 0
      %p58 = por %p56, %p57
      %p59 = scmp.ne.s32.totalorder %s45, %s46
      %p60 = scmp.eq.s32.totalorder %s24, 3
      %p61 = por %p59, %p60
      %p63 = scmp.ne.s32.totalorder %s46, %s62
      %p64 = scmp.eq.s32.totalorder %s24, 0
      %p65 = por %p63, %p64
      %s66 = ssub.s32 %s26, %s33
      %p67 = scmp.eq.s32.totalorder %s66, 0
      %s69 = sadd.s32 %s68, 1
      %s70 = scalar_select %p67, %s68, %s69
      %p73 = pneg %p67
      %p74 = scmp.eq.s32.totalorder %s18, 3
      %p75 = por %p73, %p74
      %p76 = scmp.ne.s32.totalorder %s68, %s71
      %p77 = scmp.eq.s32.totalorder %s18, 0
      %p78 = por %p76, %p77
      %p79 = scmp.ne.s32.totalorder %s68, %s71
      %p80 = scmp.eq.s32.totalorder %s23, 3
      %p81 = por %p79, %p80
      %p82 = scmp.ne.s32.totalorder %s71, %s72
      %p83 = scmp.eq.s32.totalorder %s23, 0
      %p84 = por %p82, %p83
      %p85 = scmp.ne.s32.totalorder %s71, %s72
      %p86 = scmp.eq.s32.totalorder %s24, 3
      %p87 = por %p85, %p86
      %p89 = scmp.ne.s32.totalorder %s72, %s88
      %p90 = scmp.eq.s32.totalorder %s24, 0
      %p91 = por %p89, %p90
      %s93 = sadd.s32 %s92, 1
      %p96 = scmp.eq.s32.totalorder %s18, 3
      %p97 = scmp.ne.s32.totalorder %s92, %s94
      %p98 = scmp.eq.s32.totalorder %s18, 0
      %p99 = por %p97, %p98
      %p100 = scmp.ne.s32.totalorder %s92, %s94
      %p101 = scmp.eq.s32.totalorder %s23, 3
      %p102 = por %p100, %p101
      %p103 = scmp.ne.s32.totalorder %s94, %s95
      %p104 = scmp.eq.s32.totalorder %s23, 0
      %p105 = por %p103, %p104
      %p106 = scmp.ne.s32.totalorder %s94, %s95
      %p107 = scmp.eq.s32.totalorder %s24, 3
      %p108 = por %p106, %p107
      %p110 = scmp.ne.s32.totalorder %s95, %s109
      %p111 = scmp.eq.s32.totalorder %s24, 0
      %p112 = por %p110, %p111
      %s114 = sadd.s32 %s113, 1
      %p117 = scmp.eq.s32.totalorder %s18, 3
      %p118 = scmp.ne.s32.totalorder %s113, %s115
      %p119 = scmp.eq.s32.totalorder %s18, 0
      %p120 = por %p118, %p119
      %p121 = scmp.ne.s32.totalorder %s113, %s115
      %p122 = scmp.eq.s32.totalorder %s23, 3
      %p123 = por %p121, %p122
      %p124 = scmp.ne.s32.totalorder %s115, %s116
      %p125 = scmp.eq.s32.totalorder %s23, 0
      %p126 = por %p124, %p125
      %p127 = scmp.ne.s32.totalorder %s115, %s116
      %p128 = scmp.eq.s32.totalorder %s24, 3
      %p129 = por %p127, %p128
      %p131 = scmp.ne.s32.totalorder %s116, %s130
      %p132 = scmp.eq.s32.totalorder %s24, 0
      %p133 = por %p131, %p132
      %s135 = sadd.s32 %s134, 1
      %p138 = scmp.eq.s32.totalorder %s18, 3
      %p139 = scmp.ne.s32.totalorder %s134, %s136
      %p140 = scmp.eq.s32.totalorder %s18, 0
      %p141 = por %p139, %p140
      %p142 = scmp.ne.s32.totalorder %s134, %s136
      %p143 = scmp.eq.s32.totalorder %s23, 3
      %p144 = por %p142, %p143
      %p145 = scmp.ne.s32.totalorder %s136, %s137
      %p146 = scmp.eq.s32.totalorder %s23, 0
      %p147 = por %p145, %p146
      %p148 = scmp.ne.s32.totalorder %s136, %s137
      %p149 = scmp.eq.s32.totalorder %s24, 3
      %p150 = por %p148, %p149
      %p152 = scmp.ne.s32.totalorder %s137, %s151
      %p153 = scmp.eq.s32.totalorder %s24, 0
      %p154 = por %p152, %p153
      %s156 = sadd.s32 %s155, 1
      %p159 = scmp.eq.s32.totalorder %s18, 3
      %p160 = scmp.ne.s32.totalorder %s155, %s157
      %p161 = scmp.eq.s32.totalorder %s18, 0
      %p162 = por %p160, %p161
      %p163 = scmp.ne.s32.totalorder %s155, %s157
      %p164 = scmp.eq.s32.totalorder %s23, 3
      %p165 = por %p163, %p164
      %p166 = scmp.ne.s32.totalorder %s157, %s158
      %p167 = scmp.eq.s32.totalorder %s23, 0
      %p168 = por %p166, %p167
      %p169 = scmp.ne.s32.totalorder %s157, %s158
      %p170 = scmp.eq.s32.totalorder %s24, 3
      %p171 = por %p169, %p170
      %p173 = scmp.ne.s32.totalorder %s158, %s172
      %p174 = scmp.eq.s32.totalorder %s24, 0
      %p175 = por %p173, %p174
      %s177 = sadd.s32 %s176, 1
      %p180 = scmp.eq.s32.totalorder %s18, 3
      %p181 = scmp.ne.s32.totalorder %s176, %s178
      %p182 = scmp.eq.s32.totalorder %s18, 0
      %p183 = por %p181, %p182
      %p184 = scmp.ne.s32.totalorder %s176, %s178
      %p185 = scmp.eq.s32.totalorder %s23, 3
      %p186 = por %p184, %p185
      %p187 = scmp.ne.s32.totalorder %s178, %s179
      %p188 = scmp.eq.s32.totalorder %s23, 0
      %p189 = por %p187, %p188
      %p190 = scmp.ne.s32.totalorder %s178, %s179
      %p191 = scmp.eq.s32.totalorder %s24, 3
      %p192 = por %p190, %p191
      %p194 = scmp.ne.s32.totalorder %s179, %s193
      %p195 = scmp.eq.s32.totalorder %s24, 0
      %p196 = por %p194, %p195
      %s198 = sadd.s32 %s197, 1
      %p201 = scmp.eq.s32.totalorder %s18, 3
      %p202 = scmp.ne.s32.totalorder %s197, %s199
      %p203 = scmp.eq.s32.totalorder %s18, 0
      %p204 = por %p202, %p203
      %p205 = scmp.ne.s32.totalorder %s197, %s199
      %p206 = scmp.eq.s32.totalorder %s23, 3
      %p207 = por %p205, %p206
      %p208 = scmp.ne.s32.totalorder %s199, %s200
      %p209 = scmp.eq.s32.totalorder %s23, 0
      %p210 = por %p208, %p209
      %p211 = scmp.ne.s32.totalorder %s199, %s200
      %p212 = scmp.eq.s32.totalorder %s24, 3
      %p213 = por %p211, %p212
      %p215 = scmp.ne.s32.totalorder %s200, %s214
      %p216 = scmp.eq.s32.totalorder %s24, 0
      %p217 = por %p215, %p216
      %s219 = sadd.s32 %s218, 1
      %p222 = scmp.eq.s32.totalorder %s18, 3
      %p223 = scmp.ne.s32.totalorder %s218, %s220
      %p224 = scmp.eq.s32.totalorder %s18, 0
      %p225 = por %p223, %p224
      %p226 = scmp.ne.s32.totalorder %s218, %s220
      %p227 = scmp.eq.s32.totalorder %s23, 3
      %p228 = por %p226, %p227
      %p229 = scmp.ne.s32.totalorder %s220, %s221
      %p230 = scmp.eq.s32.totalorder %s23, 0
      %p231 = por %p229, %p230
      %p232 = scmp.ne.s32.totalorder %s220, %s221
      %p233 = scmp.eq.s32.totalorder %s24, 3
      %p234 = por %p232, %p233
      %p236 = scmp.ne.s32.totalorder %s221, %s235
      %p237 = scmp.eq.s32.totalorder %s24, 0
      %p238 = por %p236, %p237
      %s239 = ssub.s32 %s25, %s37
      %s240 = ssub.s32 %s26, %s33
      %s241 = sor.u32 %s239, %s240
      %p242 = scmp.eq.s32.totalorder %s241, 0
      %s244 = sadd.s32 %s243, 1
      %s245 = scalar_select %p242, %s243, %s244
      %p248 = pneg %p242
      %p249 = scmp.eq.s32.totalorder %s18, 3
      %p250 = por %p248, %p249
      %p251 = scmp.ne.s32.totalorder %s243, %s246
      %p252 = scmp.eq.s32.totalorder %s18, 0
      %p253 = por %p251, %p252
      %p254 = scmp.ne.s32.totalorder %s243, %s246
      %p255 = scmp.eq.s32.totalorder %s23, 3
      %p256 = por %p254, %p255
      %p257 = scmp.ne.s32.totalorder %s246, %s247
      %p258 = scmp.eq.s32.totalorder %s23, 0
      %p259 = por %p257, %p258
      %p260 = scmp.ne.s32.totalorder %s246, %s247
      %p261 = scmp.eq.s32.totalorder %s24, 3
      %p262 = por %p260, %p261
      %p264 = scmp.ne.s32.totalorder %s247, %s263
      %p265 = scmp.eq.s32.totalorder %s24, 0
      %p266 = por %p264, %p265
      %p267 = scmp.le.s32.totalorder 1, %s18
      %p268 = scmp.lt.s32.totalorder %s18, 5
      %p269 = pnand %p267, %p268
      %p270 = pneg %p269
      // Predicated region
      $region9: #{tpu_custom_call.1} parent=5 // pred_check
        _
      $region10: #{tpu_custom_call.1} parent=5 // pred_check_branch
        %272 = sbr.rel (%p269) target = $region12
      $region11: #{tpu_custom_call.1} parent=5 // pred_region
        %s273 = ssub.s32 %s18, 1
        // Predicated region
        $region13: #{tpu_custom_call.1} parent=11 // pred_check
          %p274 = pneg %p105
        $region14: #{tpu_custom_call.1} parent=11 // pred_check_branch
          %276 = sbr.rel (%p274) target = $region16
        $region15: #{tpu_custom_call.1} parent=11 // pred_region
          _
        $region16: #{tpu_custom_call.1} parent=11 // pred_fallthru
          _
        // Predicated region
        $region17: #{tpu_custom_call.1} parent=11 // pred_check
          %p277 = pneg %p126
        $region18: #{tpu_custom_call.1} parent=11 // pred_check_branch
          %279 = sbr.rel (%p277) target = $region20
        $region19: #{tpu_custom_call.1} parent=11 // pred_region
          _
        $region20: #{tpu_custom_call.1} parent=11 // pred_fallthru
          _
        // Predicated region
        $region21: #{tpu_custom_call.1} parent=11 // pred_check
          %p280 = pneg %p147
        $region22: #{tpu_custom_call.1} parent=11 // pred_check_branch
          %282 = sbr.rel (%p280) target = $region24
        $region23: #{tpu_custom_call.1} parent=11 // pred_region
          _
        $region24: #{tpu_custom_call.1} parent=11 // pred_fallthru
          _
        // Predicated region
        $region25: #{tpu_custom_call.1} parent=11 // pred_check
          %p283 = pneg %p168
        $region26: #{tpu_custom_call.1} parent=11 // pred_check_branch
          %285 = sbr.rel (%p283) target = $region28
        $region27: #{tpu_custom_call.1} parent=11 // pred_region
          _
        $region28: #{tpu_custom_call.1} parent=11 // pred_fallthru
          _
        // Predicated region
        $region29: #{tpu_custom_call.1} parent=11 // pred_check
          %p286 = pneg %p189
        $region30: #{tpu_custom_call.1} parent=11 // pred_check_branch
          %288 = sbr.rel (%p286) target = $region32
        $region31: #{tpu_custom_call.1} parent=11 // pred_region
          _
        $region32: #{tpu_custom_call.1} parent=11 // pred_fallthru
          _
        // Predicated region
        $region33: #{tpu_custom_call.1} parent=11 // pred_check
          %p289 = pneg %p210
        $region34: #{tpu_custom_call.1} parent=11 // pred_check_branch
          %291 = sbr.rel (%p289) target = $region36
        $region35: #{tpu_custom_call.1} parent=11 // pred_region
          _
        $region36: #{tpu_custom_call.1} parent=11 // pred_fallthru
          _
        // Predicated region
        $region37: #{tpu_custom_call.1} parent=11 // pred_check
          %p292 = pneg %p231
        $region38: #{tpu_custom_call.1} parent=11 // pred_check_branch
          %294 = sbr.rel (%p292) target = $region40
        $region39: #{tpu_custom_call.1} parent=11 // pred_region
          _
        $region40: #{tpu_custom_call.1} parent=11 // pred_fallthru
          _
      $region12: #{tpu_custom_call.1} parent=5 // pred_fallthru
        _
      %p295 = scmp.lt.s32.totalorder %s18, 4
      // Predicated region
      $region41: #{tpu_custom_call.1} parent=5 // pred_check
        %p296 = pneg %p295
      $region42: #{tpu_custom_call.1} parent=5 // pred_check_branch
        %298 = sbr.rel (%p296) target = $region44
      $region43: #{tpu_custom_call.1} parent=5 // pred_region
        // Predicated region
        $region45: #{tpu_custom_call.1} parent=43 // pred_check
          %p299 = pneg %p52
        $region46: #{tpu_custom_call.1} parent=43 // pred_check_branch
          %301 = sbr.rel (%p299) target = $region48
        $region47: #{tpu_custom_call.1} parent=43 // pred_region
          %p302 = scmp.lt.s32.totalorder %s25, 1
          %s303 = scalar_select %p302, %s25, 1
          %p304 = scmp.lt.s32.totalorder %s26, 1
          %s305 = scalar_select %p304, %s26, 1
          %s306 = smul.addr %s305, 2
          %s307 = smul.addr %s303, 4
          %s308 = sadd.s32 %s306, %s307
          %s309 = smul.addr %s308, 4
          %s310 = scalar_lea.vmem %s0, %s309
        $region48: #{tpu_custom_call.1} parent=43 // pred_fallthru
          _
        // Predicated region
        $region49: #{tpu_custom_call.1} parent=43 // pred_check
          %p311 = pneg %p78
        $region50: #{tpu_custom_call.1} parent=43 // pred_check_branch
          %313 = sbr.rel (%p311) target = $region52
        $region51: #{tpu_custom_call.1} parent=43 // pred_region
          %p314 = scmp.lt.s32.totalorder %s26, 1
          %s315 = scalar_select %p314, %s26, 1
          %s316 = smul.addr %s315, 2
          %s317 = scalar_lea.vmem %s1, %s316
        $region52: #{tpu_custom_call.1} parent=43 // pred_fallthru
          _
      $region44: #{tpu_custom_call.1} parent=5 // pred_fallthru
        _
      %p318 = scmp.le.s32.totalorder 1, %s18
      %p319 = scmp.lt.s32.totalorder %s18, 5
      %p320 = pnand %p318, %p319
      %p321 = pneg %p320
      // Predicated region
      $region53: #{tpu_custom_call.1} parent=5 // pred_check
        _
      $region54: #{tpu_custom_call.1} parent=5 // pred_check_branch
        %323 = sbr.rel (%p320) target = $region56
      $region55: #{tpu_custom_call.1} parent=5 // pred_region
        %s324 = ssub.s32 %s18, 1
        %p325 = scmp.lt.s32.totalorder %s27, 1
        %s326 = scalar_select %p325, %s27, 1
        %p327 = scmp.lt.s32.totalorder %s28, 1
        %s328 = scalar_select %p327, %s28, 1
        %s329 = smul.addr %s328, 2
        %s330 = smul.addr %s326, 4
        %s331 = sadd.s32 %s329, %s330
        %s332 = smul.addr %s331, 4
        %s333 = scalar_lea.vmem %s0, %s332
        %p334 = pneg %p58
        %p335 = pneg %p55
        %p336 = scmp.lt.s32.totalorder %s28, 1
        %s337 = scalar_select %p336, %s28, 1
        %s338 = smul.addr %s337, 2
        %s339 = scalar_lea.vmem %s1, %s338
        %p340 = pneg %p84
        %p341 = pneg %p81
        %p342 = pneg %p105
        %p343 = pneg %p102
        %p344 = pneg %p126
        %p345 = pneg %p123
        %p346 = pneg %p147
        %p347 = pneg %p144
        %p348 = pneg %p168
        %p349 = pneg %p165
        %p350 = pneg %p189
        %p351 = pneg %p186
        %p352 = pneg %p210
        %p353 = pneg %p207
        %p354 = pneg %p231
        %p355 = pneg %p228
        %p356 = pneg %p259
        %p357 = pneg %p256
        %s358 = sand.u32 %s246, 1
        %s359 = scalar_lea.sflag [#allocation3], %s358
        %s360 = sand.u32 %s246, 1
        %s361 = smul.addr %s360, 4
        %s362 = scalar_lea.vmem [#allocation2], %s361
        %p363 = scmp.lt.s32.totalorder %s27, 1
        %s364 = scalar_select %p363, %s27, 1
        %p365 = scmp.lt.s32.totalorder %s28, 1
        %s366 = scalar_select %p365, %s28, 1
        %s367 = smul.addr %s366, 2
        %s368 = smul.addr %s364, 4
        %s369 = sadd.s32 %s367, %s368
        %s370 = smul.addr %s369, 4
        %s371 = scalar_lea.vmem %s0, %s370
        %p372 = scmp.lt.s32.totalorder %s28, 1
        %s373 = scalar_select %p372, %s28, 1
        %s374 = smul.addr %s373, 2
        %s375 = scalar_lea.vmem %s1, %s374
        %v377 = vld [vmem:[%s371] sm:$0xff]
        %v378 = vld [vmem:[%s3] sm:$0xf]
        %v379 = vld [vmem:[%s3 + $0x4] sm:$0xf]
        %v381 = vcombine.high %v377, %v377
        %v383 = vpack.c.bf16 %v377, %v377
        %v384 = vpack.c.bf16 %v381, %v381
        %v385 = vld [vmem:[%s4] sm:$0xff]
        %v386 = vld [vmem:[%s4 + $0x8] sm:$0xff]
        %388 = vset.pattern.permute.xlu0 0
        %389 = vperm.xlu0 %388, %v385
        %v390 = vpop.permute.xlu0 %389
        %393 = vset.pattern.permute.xlu0 0
        %394 = vperm.xlu0 %393, %v386
        %v395 = vpop.permute.xlu0 %394
        %v399 = vunpack.c.l.b16 %v378
        %v400 = vunpack.c.l.b16 %v379
        %v401 = vpack.c.b16 %v400, %v399
        %vm402 = vcmask 31744
        %v404 = vsel %vm402, %v401, 0
        %vm406 = vcmask 1041408
        %v408 = vsel %vm406, %v383, 0
        %v411 = vsel %vm406, %v384, 0
        %413 = vmatprep.subr.bf16.mxu0 %v411
        %414 = vmatpush1.bf16.msra.mxu0 %v408
        %415 = vmatprep.subr.bf16.mxu0 0
        %416 = vmatpush1.bf16.msra.mxu0 0
        %417 = vmatprep.subr.bf16.mxu0 0
        %418 = vmatpush1.bf16.msra.mxu0 0
        %419 = vmatprep.subr.bf16.mxu0 0
        %420 = vmatpush1.bf16.msra.mxu0 0
        %421 = vmatprep.subr.bf16.mxu0 0
        %422 = vmatpush1.bf16.msra.mxu0 0
        %423 = vmatprep.subr.bf16.mxu0 0
        %424 = vmatpush1.bf16.msra.mxu0 0
        %425 = vmatprep.subr.bf16.mxu0 0
        %426 = vmatpush1.bf16.msra.mxu0 0
        %427 = vmatprep.subr.bf16.mxu0 0
        %428 = vmatpush1.bf16.msra.mxu0 0
        %429 = vmatprep.subr.bf16.mxu0 0
        %430 = vmatpush1.bf16.msra.mxu0 0
        %431 = vmatprep.subr.bf16.mxu0 0
        %432 = vmatpush1.bf16.msra.mxu0 0
        %433 = vmatprep.subr.bf16.mxu0 0
        %434 = vmatpush1.bf16.msra.mxu0 0
        %435 = vmatprep.subr.bf16.mxu0 0
        %436 = vmatpush1.bf16.msra.mxu0 0
        %437 = vmatprep.subr.bf16.mxu0 0
        %438 = vmatpush1.bf16.msra.mxu0 0
        %439 = vmatprep.subr.bf16.mxu0 0
        %440 = vmatpush1.bf16.msra.mxu0 0
        %441 = vmatprep.subr.bf16.mxu0 0
        %442 = vmatpush1.bf16.msra.mxu0 0
        %443 = vmatprep.subr.bf16.mxu0 0
        %444 = vmatpush1.bf16.msra.mxu0 0
        %445 = vmatprep.mubr.bf16.mxu0 0
        %446 = vmatmul.mubr.bf16.gmra.mrb[0].mxu0 %v404
        %v447 = vpop.f32.mrb[0].mxu0
        %v448 = vadd.f32 %v390, %v447
        %v449 = vpop.f32.mrb[0].mxu0
        %v450 = vadd.f32 %v390, %v449
        %v451 = vpop.f32.mrb[0].mxu0
        %v452 = vadd.f32 %v395, %v451
        %v453 = vpop.f32.mrb[0].mxu0
        %v454 = vadd.f32 %v395, %v453
        %455 = vdwg.mxu0
        %v456 = vmax.f32 %v448, 0.0
        %v457 = vmax.f32 %v450, 0.0
        %v458 = vmax.f32 %v452, 0.0
        %v459 = vmax.f32 %v454, 0.0
        %v460 = vld [vmem:[%s5] sm:$0xf]
        %v461 = vpack.c.bf16 %v458, %v456
        %v462 = vpack.c.bf16 %v459, %v457
        %v463 = vld [vmem:[%s6] sm:$0xff]
        %465 = vset.pattern.permute.xlu0 0
        %466 = vperm.xlu0 %465, %v463
        %v467 = vpop.permute.xlu0 %466
        %vm469 = vcmask 130048
        %v471 = vsel %vm469, %v460, 0
        %473 = vmatprep.subr.bf16.mxu0 %v462
        %474 = vmatpush1.bf16.msra.mxu0 %v461
        %475 = vmatprep.subr.bf16.mxu0 0
        %476 = vmatpush1.bf16.msra.mxu0 0
        %477 = vmatprep.subr.bf16.mxu0 0
        %478 = vmatpush1.bf16.msra.mxu0 0
        %479 = vmatprep.subr.bf16.mxu0 0
        %480 = vmatpush1.bf16.msra.mxu0 0
        %481 = vmatprep.subr.bf16.mxu0 0
        %482 = vmatpush1.bf16.msra.mxu0 0
        %483 = vmatprep.subr.bf16.mxu0 0
        %484 = vmatpush1.bf16.msra.mxu0 0
        %485 = vmatprep.subr.bf16.mxu0 0
        %486 = vmatpush1.bf16.msra.mxu0 0
        %487 = vmatprep.subr.bf16.mxu0 0
        %488 = vmatpush1.bf16.msra.mxu0 0
        %489 = vmatprep.subr.bf16.mxu0 0
        %490 = vmatpush1.bf16.msra.mxu0 0
        %491 = vmatprep.subr.bf16.mxu0 0
        %492 = vmatpush1.bf16.msra.mxu0 0
        %493 = vmatprep.subr.bf16.mxu0 0
        %494 = vmatpush1.bf16.msra.mxu0 0
        %495 = vmatprep.subr.bf16.mxu0 0
        %496 = vmatpush1.bf16.msra.mxu0 0
        %497 = vmatprep.subr.bf16.mxu0 0
        %498 = vmatpush1.bf16.msra.mxu0 0
        %499 = vmatprep.subr.bf16.mxu0 0
        %500 = vmatpush1.bf16.msra.mxu0 0
        %501 = vmatprep.subr.bf16.mxu0 0
        %502 = vmatpush1.bf16.msra.mxu0 0
        %503 = vmatprep.subr.bf16.mxu0 0
        %504 = vmatpush1.bf16.msra.mxu0 0
        %505 = vmatprep.mubr.bf16.mxu0 0
        %506 = vmatmul.mubr.bf16.gmra.mrb[0].mxu0 %v471
        %v507 = vpop.f32.mrb[0].mxu0
        %v508 = vadd.f32 %v467, %v507
        %v509 = vpop.f32.mrb[0].mxu0
        %v510 = vadd.f32 %v467, %v509
        %v511 = vpop.f32.mrb[0].mxu0
        %v512 = vpop.f32.mrb[0].mxu0
        %513 = vdwg.mxu0
        %v514 = vld [vmem:[%s375] sm:$0x3]
        %v516 = vlaneseq
        %v517 = vshrl.u32 %v516, 7
        %v518 = vsub.s32 0, %v517
        %v519 = vrot.slane %v514, %v518
        %v520 = vlaneseq
        %v521 = vshrl.u32 %v520, 7
        %v522 = vsub.s32 1, %v521
        %v523 = vrot.slane %v514, %v522
        %v526 = vmul.f32 %v508, %v519
        %v527 = vmul.f32 %v510, %v523
        %v528 = vld [vmem:[%s2] sm:$0x3]
        %v529 = vlaneseq
        %v530 = vshrl.u32 %v529, 7
        %v531 = vsub.s32 0, %v530
        %v532 = vrot.slane %v528, %v531
        %534 = vrot.lane.b32.xlu0 %v532, 15
        %v535 = vpop.permute.xlu0 %534
        %v537 = vmul.f32 %v526, %v535
        %v538 = vmul.f32 %v527, %v535
        %v539 = vlaneseq
        %v540 = vshrl.u32 %v539, 7
        %v541 = vsub.s32 1, %v540
        %v542 = vrot.slane %v528, %v541
        %544 = vrot.lane.b32.xlu0 %v542, 17
        %v545 = vpop.permute.xlu0 %544
        %v547 = vmul.f32 %v526, %v545
        %v548 = vmul.f32 %v527, %v545
        %549 = vrot.lane.b32.xlu0 %v532, 31
        %v550 = vpop.permute.xlu0 %549
        %v552 = vmul.f32 %v526, %v550
        %v553 = vmul.f32 %v527, %v550
        %554 = vrot.lane.b32.xlu0 %v542, 33
        %v555 = vpop.permute.xlu0 %554
        %v557 = vmul.f32 %v526, %v555
        %v558 = vmul.f32 %v527, %v555
        %559 = vrot.lane.b32.xlu0 %v532, 47
        %v560 = vpop.permute.xlu0 %559
        %v562 = vmul.f32 %v526, %v560
        %v563 = vmul.f32 %v527, %v560
        %564 = vrot.lane.b32.xlu0 %v542, 49
        %v565 = vpop.permute.xlu0 %564
        %v567 = vmul.f32 %v526, %v565
        %v568 = vmul.f32 %v527, %v565
        %571 = vrot.lane.b32.xlu0 %v526, 127
        %v572 = vpop.permute.xlu0 %571
        %573 = vrot.lane.b32.xlu0 %v527, 127
        %v574 = vpop.permute.xlu0 %573
        %vm575 = vcmask 1039360
        %v576 = vsel %vm575, %v572, %v574
        %581 = vrot.lane.b32.xlu0 %v547, 126
        %v582 = vpop.permute.xlu0 %581
        %583 = vrot.lane.b32.xlu0 %v548, 126
        %v584 = vpop.permute.xlu0 %583
        %vm585 = vcmask 1031168
        %v586 = vsel %vm585, %v582, %v584
        %591 = vrot.lane.b32.xlu0 %v552, 112
        %v592 = vpop.permute.xlu0 %591
        %593 = vrot.lane.b32.xlu0 %v553, 112
        %v594 = vpop.permute.xlu0 %593
        %vm595 = vcmask 916480
        %v596 = vsel %vm595, %v592, %v594
        %599 = vrot.lane.b32.xlu0 %v526, 111
        %v600 = vpop.permute.xlu0 %599
        %601 = vrot.lane.b32.xlu0 %v527, 111
        %v602 = vpop.permute.xlu0 %601
        %vm603 = vcmask 908288
        %v604 = vsel %vm603, %v600, %v602
        %609 = vrot.lane.b32.xlu0 %v557, 110
        %v610 = vpop.permute.xlu0 %609
        %611 = vrot.lane.b32.xlu0 %v558, 110
        %v612 = vpop.permute.xlu0 %611
        %vm613 = vcmask 900096
        %v614 = vsel %vm613, %v610, %v612
        %619 = vrot.lane.b32.xlu0 %v562, 96
        %v620 = vpop.permute.xlu0 %619
        %621 = vrot.lane.b32.xlu0 %v563, 96
        %v622 = vpop.permute.xlu0 %621
        %vm623 = vcmask 785408
        %v624 = vsel %vm623, %v620, %v622
        %627 = vrot.lane.b32.xlu0 %v526, 95
        %v628 = vpop.permute.xlu0 %627
        %629 = vrot.lane.b32.xlu0 %v527, 95
        %v630 = vpop.permute.xlu0 %629
        %vm631 = vcmask 777216
        %v632 = vsel %vm631, %v628, %v630
        %637 = vrot.lane.b32.xlu0 %v567, 94
        %v638 = vpop.permute.xlu0 %637
        %639 = vrot.lane.b32.xlu0 %v568, 94
        %v640 = vpop.permute.xlu0 %639
        %vm641 = vcmask 769024
        %v642 = vsel %vm641, %v638, %v640
        %v645 = vpack.c.bf16 %v576, %v537
        %v646 = vpack.c.bf16 %v574, %v538
        %v647 = vpack.c.bf16 %v596, %v586
        %v648 = vpack.c.bf16 %v594, %v584
        %v649 = vpack.c.bf16 %v614, %v604
        %v650 = vpack.c.bf16 %v612, %v602
        %v651 = vpack.c.bf16 %v632, %v624
        %v652 = vpack.c.bf16 %v630, %v622
        %v653 = vpack.c.bf16 %v642, %v642
        %v654 = vpack.c.bf16 %v640, %v640
        %v655 = vld [vmem:[%s7] sm:$0x3]
        %v656 = vld [vmem:[%s8] sm:$0xf]
        %658 = vset.pattern.permute.xlu0 0
        %659 = vperm.xlu0 %658, %v656
        %v660 = vpop.permute.xlu0 %659
        %672 = vrot.lane.b32.xlu0 %v645, 113
        %v673 = vpop.permute.xlu0 %672
        %674 = vrot.lane.b32.xlu0 %v646, 113
        %v675 = vpop.permute.xlu0 %674
        %676 = vrot.lane.b32.xlu0 %v647, 113
        %v677 = vpop.permute.xlu0 %676
        %678 = vrot.lane.b32.xlu0 %v648, 113
        %v679 = vpop.permute.xlu0 %678
        %680 = vrot.lane.b32.xlu0 %v649, 113
        %v681 = vpop.permute.xlu0 %680
        %682 = vrot.lane.b32.xlu0 %v650, 113
        %v683 = vpop.permute.xlu0 %682
        %684 = vrot.lane.b32.xlu0 %v651, 113
        %v685 = vpop.permute.xlu0 %684
        %686 = vrot.lane.b32.xlu0 %v652, 113
        %v687 = vpop.permute.xlu0 %686
        %688 = vrot.lane.b32.xlu0 %v653, 113
        %v689 = vpop.permute.xlu0 %688
        %690 = vrot.lane.b32.xlu0 %v654, 113
        %v691 = vpop.permute.xlu0 %690
        %vm692 = vcmask 924672
        %v693 = vsel %vm692, %v673, %v675
        %v694 = vsel %vm692, %v677, %v679
        %v695 = vsel %vm692, %v681, %v683
        %v696 = vsel %vm692, %v685, %v687
        %v697 = vsel %vm692, %v689, %v691
        %vm702 = vcmask 588800
        %v704 = vsel %vm702, %v655, 0
        %vm706 = vcmask 1043456
        %v708 = vsel %vm706, %v697, 0
        %710 = vmatprep.subr.bf16.mxu0 0
        %711 = vmatpush1.bf16.msra.mxu0 %v693
        %712 = vmatprep.subr.bf16.mxu0 0
        %713 = vmatpush1.bf16.msra.mxu0 %v694
        %714 = vmatprep.subr.bf16.mxu0 0
        %715 = vmatpush1.bf16.msra.mxu0 %v695
        %716 = vmatprep.subr.bf16.mxu0 0
        %717 = vmatpush1.bf16.msra.mxu0 %v696
        %718 = vmatprep.subr.bf16.mxu0 0
        %719 = vmatpush1.bf16.msra.mxu0 %v708
        %720 = vmatprep.subr.bf16.mxu0 0
        %721 = vmatpush1.bf16.msra.mxu0 0
        %722 = vmatprep.subr.bf16.mxu0 0
        %723 = vmatpush1.bf16.msra.mxu0 0
        %724 = vmatprep.subr.bf16.mxu0 0
        %725 = vmatpush1.bf16.msra.mxu0 0
        %726 = vmatprep.subr.bf16.mxu0 0
        %727 = vmatpush1.bf16.msra.mxu0 0
        %728 = vmatprep.subr.bf16.mxu0 0
        %729 = vmatpush1.bf16.msra.mxu0 0
        %730 = vmatprep.subr.bf16.mxu0 0
        %731 = vmatpush1.bf16.msra.mxu0 0
        %732 = vmatprep.subr.bf16.mxu0 0
        %733 = vmatpush1.bf16.msra.mxu0 0
        %734 = vmatprep.subr.bf16.mxu0 0
        %735 = vmatpush1.bf16.msra.mxu0 0
        %736 = vmatprep.subr.bf16.mxu0 0
        %737 = vmatpush1.bf16.msra.mxu0 0
        %738 = vmatprep.subr.bf16.mxu0 0
        %739 = vmatpush1.bf16.msra.mxu0 0
        %740 = vmatprep.subr.bf16.mxu0 0
        %741 = vmatpush1.bf16.msra.mxu0 0
        %742 = vmatprep.mubr.bf16.mxu0 0
        %743 = vmatmul.mubr.bf16.gmra.mrb[0].mxu0 %v704
        %v744 = vpop.f32.mrb[0].mxu0
        %v745 = vadd.f32 %v660, %v744
        %v746 = vpop.f32.mrb[0].mxu0
        %v747 = vpop.f32.mrb[0].mxu0
        %v748 = vpop.f32.mrb[0].mxu0
        %749 = vdwg.mxu0
        %751 = vrot.lane.b32.xlu0 %v745, 32
        %v752 = vpop.permute.xlu0 %751
        %v753 = vrot.slane %v752, 4
        %vm754 = vcmask 261120
        %v755 = vsel %vm754, %v753, %v752
        %v757 = vadd.f32 %v377, %v755
        %v759 = vcombine.high %v757, %v757
        %760 = vrot.lane.b32.xlu0 %v757, 96
        %v761 = vpop.permute.xlu0 %760
        %762 = vrot.lane.b32.xlu0 %v759, 96
        %v763 = vpop.permute.xlu0 %762
        %v764 = vsel %vm623, %v761, %v763
        %766 = vst [vmem:[%s362] sm:$0xf] %v764
        %s767 = sand.u32 %s246, 1
        %s768 = scalar_lea.sflag [#allocation3], %s767
        %s769 = sand.u32 %s246, 1
        %s770 = smul.addr %s769, 4
        %s771 = scalar_lea.vmem [#allocation2], %s770
        // Predicated region
        $region57: #{tpu_custom_call.1} parent=55 // pred_check
          %p772 = pneg %p256
        $region58: #{tpu_custom_call.1} parent=55 // pred_check_branch
          %774 = sbr.rel (%p772) target = $region60
        $region59: #{tpu_custom_call.1} parent=55 // pred_region
          %s776 = ssub.s32 64, 64
          %777 = vsyncadd %s768, %s776
          %s778 = smul.addr %s27, 2
          %s779 = sadd.s32 %s28, %s778
          %s780 = smul.addr %s779, 64
          %s781 = scalar_lea.hbm %s9, %s780
          %s783 = sshll.u32 %s771, 4
          %s784 = int_to_ptr.vmem [resolvable:$true] %s783
          %786 = dma.vmem_to_hbm [thread:$0]  %s784, 64, %s781, %s768
        $region60: #{tpu_custom_call.1} parent=55 // pred_fallthru
          _
      $region56: #{tpu_custom_call.1} parent=5 // pred_fallthru
        _
      %p787 = scmp.le.s32.totalorder 2, %s18
      // Predicated region
      $region61: #{tpu_custom_call.1} parent=5 // pred_check
        %p788 = pneg %p787
      $region62: #{tpu_custom_call.1} parent=5 // pred_check_branch
        %790 = sbr.rel (%p788) target = $region64
      $region63: #{tpu_custom_call.1} parent=5 // pred_region
        %s791 = ssub.s32 %s18, 2
        // Predicated region
        $region65: #{tpu_custom_call.1} parent=63 // pred_check
          %p792 = pneg %p262
        $region66: #{tpu_custom_call.1} parent=63 // pred_check_branch
          %794 = sbr.rel (%p792) target = $region68
        $region67: #{tpu_custom_call.1} parent=63 // pred_region
          %s795 = sand.u32 %s247, 1
          %s796 = scalar_lea.sflag [#allocation3], %s795
          %s797 = sand.u32 %s247, 1
          %s798 = smul.addr %s797, 4
          %s799 = scalar_lea.vmem [#allocation2], %s798
          %800 = dma.done %s796, 64
        $region68: #{tpu_custom_call.1} parent=63 // pred_fallthru
          _
      $region64: #{tpu_custom_call.1} parent=5 // pred_fallthru
        _
    $region6: #{tpu_custom_call.1} parent=1 // loop_footer
      %s22 = sadd.s32 1, %s18
    $region7: #{tpu_custom_call.1} parent=1 // loop_footer_branch
      %17 = sbr.rel target = $region3
    $region8: #{tpu_custom_call.1} parent=1 // loop_exit
      _
    %801 = vsyncpa [#allocation3], 1
    %s802 = scalar_lea.sflag [#allocation3], 1
    %803 = vsyncpa %s802, 1

</llo_original>
